<compile_context>
chip_gen: v5e
topology: v5e:2x2
jax: 0.10.0
libtpu: 0.0.40
codegen_flags: <defaults>
</compile_context>

<pallas_src>
import functools

import jax
import jax.numpy as jnp
import numpy as np
from jax import lax
from jax.experimental import pallas as pl
from jax.experimental.pallas import tpu as pltpu

_LANES = 128


def _round_up(x, m):
    return ((x + m - 1) // m) * m


def _cdiv(a, b):
    return -(-a // b)


# ----------------------------------------------------------------------------
# Kernel
# ----------------------------------------------------------------------------
def _dice_partial_kernel(x_ref, t_ref, inter_ref, card_ref, *,
                         hw, tiles_per_split, needs_mask):
    """Accumulates per-(split, image, class) lane-dense partial sums.

    x_ref     : (1, C, R, 128) logits tile
    t_ref     : (1, 1, R, 128) integer target tile
    inter_ref : (1, 1, C, 128) accumulator  sum(probs * onehot)
    card_ref  : (1, 1, C, 128) accumulator  sum(probs + onehot)
    """
    s = pl.program_id(0)          # megacore split half
    j = pl.program_id(2)          # row-tile within this half (reduction axis)

    @pl.when(j == 0)
    def _init():
        inter_ref[...] = jnp.zeros_like(inter_ref)
        card_ref[...] = jnp.zeros_like(card_ref)

    C = x_ref.shape[1]
    R = x_ref.shape[2]

    t = t_ref[0, 0].astype(jnp.int32)                         # (R, 128)

    if needs_mask:
        # Global pixel index of each element of this tile.  Anything >= hw is
        # the ragged tail / split overrun and must not contribute.  Use a
        # select (jnp.where) so possible inf/NaN garbage in out-of-bounds
        # lanes cannot poison the sums.
        gj = s * tiles_per_split + j
        ri = lax.broadcasted_iota(jnp.int32, (R, _LANES), 0)
        li = lax.broadcasted_iota(jnp.int32, (R, _LANES), 1)
        pix = (gj * R + ri) * _LANES + li
        valid = pix < hw
        t = jnp.where(valid, t, -1)        # -1 matches no class -> onehot = 0
    else:
        valid = None

    def accumulate(c, probs_c):
        if needs_mask:
            probs_c = jnp.where(valid, probs_c, 0.0)
        onehot_c = (t == c).astype(jnp.float32)
        # Sublane (row) reduce only: plain vector adds + tiny in-vreg fold;
        # the 128-lane reduce happens in the wrapper.
        inter_ref[0, 0, c:c + 1, :] += jnp.sum(probs_c * onehot_c,
                                               axis=0, keepdims=True)
        card_ref[0, 0, c:c + 1, :] += jnp.sum(probs_c + onehot_c,
                                              axis=0, keepdims=True)

    if C == 1:
        # NOTE: mirrors the PyTorch module's scatter_ on a size-1 class dim,
        # which is only well defined when every target index is 0.
        xx = x_ref[0, 0].astype(jnp.float32)
        probs0 = pl.reciprocal(1.0 + jnp.exp(-xx), approx=False)   # sigmoid
        accumulate(0, probs0)
    else:
        # Softmax over the (small, unrolled) class axis — pure VPU/EUP work.
        x = [x_ref[0, c].astype(jnp.float32) for c in range(C)]    # C x (R,128)
        m = x[0]
        for c in range(1, C):
            m = jnp.maximum(m, x[c])
        e = [jnp.exp(x[c] - m) for c in range(C)]
        z = e[0]
        for c in range(1, C):
            z = z + e[c]
        inv = pl.reciprocal(z, approx=False)   # exact: kernel is memory-bound
        for c in range(C):
            accumulate(c, e[c] * inv)


# ----------------------------------------------------------------------------
# Tile-size / VMEM policy
# ----------------------------------------------------------------------------
def _vmem_policy():
    try:
        phys = int(pltpu.get_tpu_info().vmem_capacity_bytes)
    except Exception:
        phys = 64 * 1024 * 1024            # conservative (v7x-sized) fallback
    # Scoped VMEM requested from the compiler (headroom for Mosaic internals),
    # and the fraction of it we budget for our own tiles + temporaries.
    vmem_limit = min(int(phys * 0.70), 100 * 1024 * 1024)
    budget = int(vmem_limit * 0.80)
    # ~256K pixels/step on the high-bandwidth / 64 MiB-VMEM generation (v7x);
    # ~128K pixels/step is already >85-90% of the v5e/v6e HBM roofline.
    r_target = 2048 if phys <= 80 * 1024 * 1024 else 1024
    return vmem_limit, budget, r_target


def _select_rows_per_tile(C, rows_total, x_item, t_item, budget_bytes,
                          r_target, override=None):
    if override is None:
        # Per-step VMEM ~= double-buffered input tiles + f32 softmax temps:
        #   2 * R*128*(C*x_item + t_item)  +  (2*C + 6) * R*128*4
        per_row = _LANES * (2 * (C * x_item + t_item) + (2 * C + 6) * 4)
        r = max(8, budget_bytes // per_row)
        r = min(r, r_target)
    else:
        r = int(override)
    if r >= rows_total:
        return rows_total                  # whole image in one full-dim tile
    return max(8, (r // 8) * 8)            # sublane-aligned ragged tiling


# ----------------------------------------------------------------------------
# Wrapper
# ----------------------------------------------------------------------------
@functools.partial(jax.jit, static_argnames=("reduction", "rows_per_tile"))
def dice_loss(logits, target, smooth=1.0, reduction="mean", rows_per_tile=None):
    """Dice loss matching the PyTorch DiceLoss.forward semantics.

    logits: (N, C, H, W) float (f32 or bf16 — upcast happens in-kernel)
    target: (N, H, W) integer class indices
    """
    N, C, H, W = logits.shape
    HW = H * W
    HW128 = _round_up(HW, _LANES)
    rows_total = HW128 // _LANES

    x_item = jnp.dtype(logits.dtype).itemsize
    t_item = jnp.dtype(target.dtype).itemsize

    vmem_limit, budget, r_target = _vmem_policy()
    R = _select_rows_per_tile(C, rows_total, x_item, t_item, budget, r_target,
                              rows_per_tile)

    n_row_blocks = _cdiv(rows_total, R)
    # Megacore coverage on v7x when the batch axis alone can't use both cores
    # (N == 1 or odd N): split the row-tile range 2 ways ("parallel" axis).
    split = 2 if (N % 2 == 1 and n_row_blocks >= 2) else 1
    tiles_per_split = _cdiv(n_row_blocks, split)
    covered = split * tiles_per_split * R * _LANES
    needs_mask = covered != HW

    # Sublane/lane-dense pixel layout: (N, C, HW/128, 128).  The reshape is a
    # free metadata change when HW is a multiple of 128 (the common case).
    if HW128 == HW:
        x4 = logits.reshape(N, C, rows_total, _LANES)
        t4 = target.reshape(N, 1, rows_total, _LANES)
    else:
        # TODO(synk): rare ragged case (H*W % 128 != 0) pays one extra HBM
        # round trip for a <=127-column pad; padded pixels are masked in-kernel.
        pad = HW128 - HW
        x4 = jnp.pad(logits.reshape(N, C, HW),
                     ((0, 0), (0, 0), (0, pad))).reshape(N, C, rows_total, _LANES)
        t4 = jnp.pad(target.reshape(N, 1, HW),
                     ((0, 0), (0, 0), (0, pad))).reshape(N, 1, rows_total, _LANES)

    last_blk = n_row_blocks - 1

    def in_map(s, n, j):
        # Clamp so a split-overrun tile re-reads the last valid block; its
        # contribution is masked to zero inside the kernel.
        return (n, 0, jnp.minimum(s * tiles_per_split + j, last_blk), 0)

    def out_map(s, n, j):
        return (s, n, 0, 0)

    kern = functools.partial(
        _dice_partial_kernel,
        hw=HW, tiles_per_split=tiles_per_split, needs_mask=needs_mask)

    inter, card = pl.pallas_call(
        kern,
        out_shape=(jax.ShapeDtypeStruct((split, N, C, _LANES), jnp.float32),
                   jax.ShapeDtypeStruct((split, N, C, _LANES), jnp.float32)),
        grid_spec=pltpu.PrefetchScalarGridSpec(
            num_scalar_prefetch=0,
            grid=(split, N, tiles_per_split),
            in_specs=[
                pl.BlockSpec((1, C, R, _LANES), in_map),
                pl.BlockSpec((1, 1, R, _LANES), in_map),
            ],
            out_specs=(
                pl.BlockSpec((1, 1, C, _LANES), out_map),
                pl.BlockSpec((1, 1, C, _LANES), out_map),
            ),
        ),
        compiler_params=pltpu.CompilerParams(
            dimension_semantics=("parallel", "parallel", "arbitrary"),
            vmem_limit_bytes=vmem_limit),
    )(x4, t4)

    # Tiny O(C*128) finalize on the kernel's lane-dense partial sums.
    inter_c = jnp.sum(inter, axis=(0, 1, 3))      # (C,)
    card_c = jnp.sum(card, axis=(0, 1, 3))        # (C,)
    dice = (2.0 * inter_c + smooth) / (card_c + smooth)
    dl = 1.0 - dice
    if reduction == "mean":
        return jnp.mean(dl)
    elif reduction == "sum":
        return jnp.sum(dl)
    # PyTorch module returns the unreduced per-class vector otherwise.
    return dl


# ----------------------------------------------------------------------------
# Pure-JAX reference (mirrors the PyTorch module)
# ----------------------------------------------------------------------------
def dice_loss_ref(logits, target, smooth=1.0, reduction="mean"):
    if logits.shape[1] == 1:
        probs = jax.nn.sigmoid(logits)
    else:
        probs = jax.nn.softmax(logits, axis=1)
    C = logits.shape[1]
    onehot = jax.nn.one_hot(target, C, axis=1, dtype=probs.dtype)
    dims = (0,) + tuple(range(2, target.ndim + 1))
    inter = jnp.sum(probs * onehot, axis=dims)
    card = jnp.sum(probs + onehot, axis=dims)
    dl = 1.0 - (2.0 * inter + smooth) / (card + smooth)
    if reduction == "mean":
        return jnp.mean(dl)
    elif reduction == "sum":
        return jnp.sum(dl)
    return dl


if __name__ == "__main__":
    key = jax.random.PRNGKey(0)
    k1, k2, k3, k4, k5 = jax.random.split(key, 5)

    # Main shape: batch=2, classes=4, 16x16 (HW=256, multiple of 128).
    N, C, H, W = 2, 4, 16, 16
    logits = jax.random.normal(k1, (N, C, H, W), dtype=jnp.float32)
    target = jax.random.randint(k2, (N, H, W), 0, C, dtype=jnp.int32)
    out = jax.block_until_ready(dice_loss(logits, target, smooth=1.0,
                                          reduction="mean"))
    ref = jax.block_until_ready(dice_loss_ref(logits, target, smooth=1.0,
                                              reduction="mean"))
    np.testing.assert_allclose(np.asarray(out), np.asarray(ref),
                               rtol=1e-5, atol=1e-5)

    # Edge paths: HW % 128 != 0 (pad fallback), ragged row tiles, odd batch
    # -> 2-way split, in-kernel where-masking, index-map clamping.
    N2, C2, H2, W2 = 1, 3, 16, 74          # HW = 1184
    logits2 = jax.random.normal(k3, (N2, C2, H2, W2), dtype=jnp.float32)
    target2 = jax.random.randint(k4, (N2, H2, W2), 0, C2, dtype=jnp.int32)
    out2 = jax.block_until_ready(dice_loss(logits2, target2, smooth=1.0,
                                           reduction="sum", rows_per_tile=8))
    ref2 = jax.block_until_ready(dice_loss_ref(logits2, target2, smooth=1.0,
                                               reduction="sum"))
    np.testing.assert_allclose(np.asarray(out2), np.asarray(ref2),
                               rtol=1e-5, atol=1e-5)

    # C == 1 sigmoid branch (PyTorch scatter-on-size-1-dim quirk: targets = 0).
    logits3 = jax.random.normal(k5, (2, 1, 8, 16), dtype=jnp.float32)
    target3 = jnp.zeros((2, 8, 16), dtype=jnp.int32)
    out3 = jax.block_until_ready(dice_loss(logits3, target3))
    ref3 = jax.block_until_ready(dice_loss_ref(logits3, target3))
    np.testing.assert_allclose(np.asarray(out3), np.asarray(ref3),
                               rtol=1e-5, atol=1e-5)

    print("KERNEL_OK")
</pallas_src>

<mosaic_0001>
module attributes {stable_mosaic.version = 11 : i64} {
  func.func @_dice_partial_kernel(%arg0: i32, %arg1: i32, %arg2: i32, %arg3: memref<1x4x2x128xf32, #tpu.memory_space<vmem>>, %arg4: memref<1x1x2x128xi32, #tpu.memory_space<vmem>>, %arg5: memref<1x1x4x128xf32, #tpu.memory_space<vmem>>, %arg6: memref<1x1x4x128xf32, #tpu.memory_space<vmem>>) attributes {dimension_semantics = [#tpu.dimension_semantics<parallel>, #tpu.dimension_semantics<parallel>, #tpu.dimension_semantics<arbitrary>], iteration_bounds = array<i64: 1, 2, 1>, scalar_prefetch = 0 : i64, scratch_operands = 0 : i64, tpu.core_type = #tpu.core_type<tc>, window_params = [{transform_indices = @transform_0, window_bounds = array<i64: 1, 4, 2, 128>}, {transform_indices = @transform_1, window_bounds = array<i64: 1, 1, 2, 128>}, {transform_indices = @transform_2, window_bounds = array<i64: 1, 1, 4, 128>}, {transform_indices = @transform_3, window_bounds = array<i64: 1, 1, 4, 128>}]} {
    %c0_i32 = arith.constant 0 : i32
    %0 = arith.cmpi eq, %arg2, %c0_i32 : i32
    %1 = arith.extui %0 : i1 to i32
    %c0_i32_0 = arith.constant 0 : i32
    %2 = arith.cmpi ne, %1, %c0_i32_0 : i32
    scf.if %2 {
      %cst_89 = arith.constant 0.000000e+00 : f32
      %120 = vector.broadcast %cst_89 : f32 to vector<1x1x4x128xf32>
      %c0_90 = arith.constant 0 : index
      %c0_91 = arith.constant 0 : index
      %c0_92 = arith.constant 0 : index
      %c0_93 = arith.constant 0 : index
      %121 = vector.load %arg5[%c0_90, %c0_91, %c0_92, %c0_93] : memref<1x1x4x128xf32, #tpu.memory_space<vmem>>, vector<1x1x4x128xf32>
      tpu.vector_store %arg5[%c0_90, %c0_91, %c0_92, %c0_93], %120 {strides = array<i32>} : memref<1x1x4x128xf32, #tpu.memory_space<vmem>>, vector<1x1x4x128xf32>,
      %cst_94 = arith.constant 0.000000e+00 : f32
      %122 = vector.broadcast %cst_94 : f32 to vector<1x1x4x128xf32>
      %c0_95 = arith.constant 0 : index
      %c0_96 = arith.constant 0 : index
      %c0_97 = arith.constant 0 : index
      %c0_98 = arith.constant 0 : index
      %123 = vector.load %arg6[%c0_95, %c0_96, %c0_97, %c0_98] : memref<1x1x4x128xf32, #tpu.memory_space<vmem>>, vector<1x1x4x128xf32>
      tpu.vector_store %arg6[%c0_95, %c0_96, %c0_97, %c0_98], %122 {strides = array<i32>} : memref<1x1x4x128xf32, #tpu.memory_space<vmem>>, vector<1x1x4x128xf32>,
    } else {
    }
    %c0 = arith.constant 0 : index
    %c0_1 = arith.constant 0 : index
    %c0_2 = arith.constant 0 : index
    %c0_3 = arith.constant 0 : index
    %3 = vector.load %arg4[%c0, %c0_1, %c0_2, %c0_3] : memref<1x1x2x128xi32, #tpu.memory_space<vmem>>, vector<1x1x2x128xi32>
    %4 = vector.shape_cast %3 : vector<1x1x2x128xi32> to vector<2x128xi32>
    %c0_4 = arith.constant 0 : index
    %c0_5 = arith.constant 0 : index
    %c0_6 = arith.constant 0 : index
    %c0_7 = arith.constant 0 : index
    %5 = vector.load %arg3[%c0_4, %c0_5, %c0_6, %c0_7] : memref<1x4x2x128xf32, #tpu.memory_space<vmem>>, vector<1x1x2x128xf32>
    %6 = vector.shape_cast %5 : vector<1x1x2x128xf32> to vector<2x128xf32>
    %c0_8 = arith.constant 0 : index
    %c1 = arith.constant 1 : index
    %c0_9 = arith.constant 0 : index
    %c0_10 = arith.constant 0 : index
    %7 = vector.load %arg3[%c0_8, %c1, %c0_9, %c0_10] : memref<1x4x2x128xf32, #tpu.memory_space<vmem>>, vector<1x1x2x128xf32>
    %8 = vector.shape_cast %7 : vector<1x1x2x128xf32> to vector<2x128xf32>
    %c0_11 = arith.constant 0 : index
    %c2 = arith.constant 2 : index
    %c0_12 = arith.constant 0 : index
    %c0_13 = arith.constant 0 : index
    %9 = vector.load %arg3[%c0_11, %c2, %c0_12, %c0_13] : memref<1x4x2x128xf32, #tpu.memory_space<vmem>>, vector<1x1x2x128xf32>
    %10 = vector.shape_cast %9 : vector<1x1x2x128xf32> to vector<2x128xf32>
    %c0_14 = arith.constant 0 : index
    %c3 = arith.constant 3 : index
    %c0_15 = arith.constant 0 : index
    %c0_16 = arith.constant 0 : index
    %11 = vector.load %arg3[%c0_14, %c3, %c0_15, %c0_16] : memref<1x4x2x128xf32, #tpu.memory_space<vmem>>, vector<1x1x2x128xf32>
    %12 = vector.shape_cast %11 : vector<1x1x2x128xf32> to vector<2x128xf32>
    %13 = arith.maximumf %6, %8 : vector<2x128xf32>
    %14 = arith.maximumf %13, %10 : vector<2x128xf32>
    %15 = arith.maximumf %14, %12 : vector<2x128xf32>
    %16 = arith.subf %6, %15 : vector<2x128xf32>
    %17 = math.exp %16 : vector<2x128xf32>
    %18 = arith.subf %8, %15 : vector<2x128xf32>
    %19 = math.exp %18 : vector<2x128xf32>
    %20 = arith.subf %10, %15 : vector<2x128xf32>
    %21 = math.exp %20 : vector<2x128xf32>
    %22 = arith.subf %12, %15 : vector<2x128xf32>
    %23 = math.exp %22 : vector<2x128xf32>
    %24 = arith.addf %17, %19 : vector<2x128xf32>
    %25 = arith.addf %24, %21 : vector<2x128xf32>
    %26 = arith.addf %25, %23 : vector<2x128xf32>
    %27 = tpu.reciprocal %26 : vector<2x128xf32> -> vector<2x128xf32>
    %28 = arith.mulf %17, %27 : vector<2x128xf32>
    %c0_i32_17 = arith.constant 0 : i32
    %29 = vector.broadcast %c0_i32_17 : i32 to vector<2x128xi32>
    %30 = arith.cmpi eq, %4, %29 : vector<2x128xi32>
    %31 = arith.extui %30 : vector<2x128xi1> to vector<2x128xi32>
    %32 = arith.sitofp %31 : vector<2x128xi32> to vector<2x128xf32>
    %c0_18 = arith.constant 0 : index
    %c0_19 = arith.constant 0 : index
    %c0_20 = arith.constant 0 : index
    %c0_21 = arith.constant 0 : index
    %33 = vector.load %arg5[%c0_18, %c0_19, %c0_20, %c0_21] : memref<1x1x4x128xf32, #tpu.memory_space<vmem>>, vector<1x1x1x128xf32>
    %34 = vector.shape_cast %33 : vector<1x1x1x128xf32> to vector<1x128xf32>
    %35 = arith.mulf %28, %32 : vector<2x128xf32>
    %cst = arith.constant dense<0.000000e+00> : vector<128xf32>
    %36 = vector.multi_reduction <add>, %35, %cst [0] : vector<2x128xf32> to vector<128xf32>
    %37 = vector.shape_cast %36 : vector<128xf32> to vector<1x128xf32>
    %38 = arith.addf %34, %37 : vector<1x128xf32>
    %c0_22 = arith.constant 0 : index
    %c0_23 = arith.constant 0 : index
    %c0_24 = arith.constant 0 : index
    %c0_25 = arith.constant 0 : index
    %39 = vector.load %arg5[%c0_22, %c0_23, %c0_24, %c0_25] : memref<1x1x4x128xf32, #tpu.memory_space<vmem>>, vector<1x1x1x128xf32>
    %40 = vector.shape_cast %39 : vector<1x1x1x128xf32> to vector<1x128xf32>
    %41 = vector.shape_cast %38 : vector<1x128xf32> to vector<1x1x1x128xf32>
    tpu.vector_store %arg5[%c0_22, %c0_23, %c0_24, %c0_25], %41 {strides = array<i32>} : memref<1x1x4x128xf32, #tpu.memory_space<vmem>>, vector<1x1x1x128xf32>,
    %c0_26 = arith.constant 0 : index
    %c0_27 = arith.constant 0 : index
    %c0_28 = arith.constant 0 : index
    %c0_29 = arith.constant 0 : index
    %42 = vector.load %arg6[%c0_26, %c0_27, %c0_28, %c0_29] : memref<1x1x4x128xf32, #tpu.memory_space<vmem>>, vector<1x1x1x128xf32>
    %43 = vector.shape_cast %42 : vector<1x1x1x128xf32> to vector<1x128xf32>
    %44 = arith.addf %28, %32 : vector<2x128xf32>
    %cst_30 = arith.constant dense<0.000000e+00> : vector<128xf32>
    %45 = vector.multi_reduction <add>, %44, %cst_30 [0] : vector<2x128xf32> to vector<128xf32>
    %46 = vector.shape_cast %45 : vector<128xf32> to vector<1x128xf32>
    %47 = arith.addf %43, %46 : vector<1x128xf32>
    %c0_31 = arith.constant 0 : index
    %c0_32 = arith.constant 0 : index
    %c0_33 = arith.constant 0 : index
    %c0_34 = arith.constant 0 : index
    %48 = vector.load %arg6[%c0_31, %c0_32, %c0_33, %c0_34] : memref<1x1x4x128xf32, #tpu.memory_space<vmem>>, vector<1x1x1x128xf32>
    %49 = vector.shape_cast %48 : vector<1x1x1x128xf32> to vector<1x128xf32>
    %50 = vector.shape_cast %47 : vector<1x128xf32> to vector<1x1x1x128xf32>
    tpu.vector_store %arg6[%c0_31, %c0_32, %c0_33, %c0_34], %50 {strides = array<i32>} : memref<1x1x4x128xf32, #tpu.memory_space<vmem>>, vector<1x1x1x128xf32>,
    %51 = arith.mulf %19, %27 : vector<2x128xf32>
    %c1_i32 = arith.constant 1 : i32
    %52 = vector.broadcast %c1_i32 : i32 to vector<2x128xi32>
    %53 = arith.cmpi eq, %4, %52 : vector<2x128xi32>
    %54 = arith.extui %53 : vector<2x128xi1> to vector<2x128xi32>
    %55 = arith.sitofp %54 : vector<2x128xi32> to vector<2x128xf32>
    %c0_35 = arith.constant 0 : index
    %c0_36 = arith.constant 0 : index
    %c1_37 = arith.constant 1 : index
    %c0_38 = arith.constant 0 : index
    %56 = vector.load %arg5[%c0_35, %c0_36, %c1_37, %c0_38] : memref<1x1x4x128xf32, #tpu.memory_space<vmem>>, vector<1x1x1x128xf32>
    %57 = vector.shape_cast %56 : vector<1x1x1x128xf32> to vector<1x128xf32>
    %58 = arith.mulf %51, %55 : vector<2x128xf32>
    %cst_39 = arith.constant dense<0.000000e+00> : vector<128xf32>
    %59 = vector.multi_reduction <add>, %58, %cst_39 [0] : vector<2x128xf32> to vector<128xf32>
    %60 = vector.shape_cast %59 : vector<128xf32> to vector<1x128xf32>
    %61 = arith.addf %57, %60 : vector<1x128xf32>
    %c0_40 = arith.constant 0 : index
    %c0_41 = arith.constant 0 : index
    %c1_42 = arith.constant 1 : index
    %c0_43 = arith.constant 0 : index
    %62 = vector.load %arg5[%c0_40, %c0_41, %c1_42, %c0_43] : memref<1x1x4x128xf32, #tpu.memory_space<vmem>>, vector<1x1x1x128xf32>
    %63 = vector.shape_cast %62 : vector<1x1x1x128xf32> to vector<1x128xf32>
    %64 = vector.shape_cast %61 : vector<1x128xf32> to vector<1x1x1x128xf32>
    tpu.vector_store %arg5[%c0_40, %c0_41, %c1_42, %c0_43], %64 {strides = array<i32>} : memref<1x1x4x128xf32, #tpu.memory_space<vmem>>, vector<1x1x1x128xf32>,
    %c0_44 = arith.constant 0 : index
    %c0_45 = arith.constant 0 : index
    %c1_46 = arith.constant 1 : index
    %c0_47 = arith.constant 0 : index
    %65 = vector.load %arg6[%c0_44, %c0_45, %c1_46, %c0_47] : memref<1x1x4x128xf32, #tpu.memory_space<vmem>>, vector<1x1x1x128xf32>
    %66 = vector.shape_cast %65 : vector<1x1x1x128xf32> to vector<1x128xf32>
    %67 = arith.addf %51, %55 : vector<2x128xf32>
    %cst_48 = arith.constant dense<0.000000e+00> : vector<128xf32>
    %68 = vector.multi_reduction <add>, %67, %cst_48 [0] : vector<2x128xf32> to vector<128xf32>
    %69 = vector.shape_cast %68 : vector<128xf32> to vector<1x128xf32>
    %70 = arith.addf %66, %69 : vector<1x128xf32>
    %c0_49 = arith.constant 0 : index
    %c0_50 = arith.constant 0 : index
    %c1_51 = arith.constant 1 : index
    %c0_52 = arith.constant 0 : index
    %71 = vector.load %arg6[%c0_49, %c0_50, %c1_51, %c0_52] : memref<1x1x4x128xf32, #tpu.memory_space<vmem>>, vector<1x1x1x128xf32>
    %72 = vector.shape_cast %71 : vector<1x1x1x128xf32> to vector<1x128xf32>
    %73 = vector.shape_cast %70 : vector<1x128xf32> to vector<1x1x1x128xf32>
    tpu.vector_store %arg6[%c0_49, %c0_50, %c1_51, %c0_52], %73 {strides = array<i32>} : memref<1x1x4x128xf32, #tpu.memory_space<vmem>>, vector<1x1x1x128xf32>,
    %74 = arith.mulf %21, %27 : vector<2x128xf32>
    %c2_i32 = arith.constant 2 : i32
    %75 = vector.broadcast %c2_i32 : i32 to vector<2x128xi32>
    %76 = arith.cmpi eq, %4, %75 : vector<2x128xi32>
    %77 = arith.extui %76 : vector<2x128xi1> to vector<2x128xi32>
    %78 = arith.sitofp %77 : vector<2x128xi32> to vector<2x128xf32>
    %c0_53 = arith.constant 0 : index
    %c0_54 = arith.constant 0 : index
    %c2_55 = arith.constant 2 : index
    %c0_56 = arith.constant 0 : index
    %79 = vector.load %arg5[%c0_53, %c0_54, %c2_55, %c0_56] : memref<1x1x4x128xf32, #tpu.memory_space<vmem>>, vector<1x1x1x128xf32>
    %80 = vector.shape_cast %79 : vector<1x1x1x128xf32> to vector<1x128xf32>
    %81 = arith.mulf %74, %78 : vector<2x128xf32>
    %cst_57 = arith.constant dense<0.000000e+00> : vector<128xf32>
    %82 = vector.multi_reduction <add>, %81, %cst_57 [0] : vector<2x128xf32> to vector<128xf32>
    %83 = vector.shape_cast %82 : vector<128xf32> to vector<1x128xf32>
    %84 = arith.addf %80, %83 : vector<1x128xf32>
    %c0_58 = arith.constant 0 : index
    %c0_59 = arith.constant 0 : index
    %c2_60 = arith.constant 2 : index
    %c0_61 = arith.constant 0 : index
    %85 = vector.load %arg5[%c0_58, %c0_59, %c2_60, %c0_61] : memref<1x1x4x128xf32, #tpu.memory_space<vmem>>, vector<1x1x1x128xf32>
    %86 = vector.shape_cast %85 : vector<1x1x1x128xf32> to vector<1x128xf32>
    %87 = vector.shape_cast %84 : vector<1x128xf32> to vector<1x1x1x128xf32>
    tpu.vector_store %arg5[%c0_58, %c0_59, %c2_60, %c0_61], %87 {strides = array<i32>} : memref<1x1x4x128xf32, #tpu.memory_space<vmem>>, vector<1x1x1x128xf32>,
    %c0_62 = arith.constant 0 : index
    %c0_63 = arith.constant 0 : index
    %c2_64 = arith.constant 2 : index
    %c0_65 = arith.constant 0 : index
    %88 = vector.load %arg6[%c0_62, %c0_63, %c2_64, %c0_65] : memref<1x1x4x128xf32, #tpu.memory_space<vmem>>, vector<1x1x1x128xf32>
    %89 = vector.shape_cast %88 : vector<1x1x1x128xf32> to vector<1x128xf32>
    %90 = arith.addf %74, %78 : vector<2x128xf32>
    %cst_66 = arith.constant dense<0.000000e+00> : vector<128xf32>
    %91 = vector.multi_reduction <add>, %90, %cst_66 [0] : vector<2x128xf32> to vector<128xf32>
    %92 = vector.shape_cast %91 : vector<128xf32> to vector<1x128xf32>
    %93 = arith.addf %89, %92 : vector<1x128xf32>
    %c0_67 = arith.constant 0 : index
    %c0_68 = arith.constant 0 : index
    %c2_69 = arith.constant 2 : index
    %c0_70 = arith.constant 0 : index
    %94 = vector.load %arg6[%c0_67, %c0_68, %c2_69, %c0_70] : memref<1x1x4x128xf32, #tpu.memory_space<vmem>>, vector<1x1x1x128xf32>
    %95 = vector.shape_cast %94 : vector<1x1x1x128xf32> to vector<1x128xf32>
    %96 = vector.shape_cast %93 : vector<1x128xf32> to vector<1x1x1x128xf32>
    tpu.vector_store %arg6[%c0_67, %c0_68, %c2_69, %c0_70], %96 {strides = array<i32>} : memref<1x1x4x128xf32, #tpu.memory_space<vmem>>, vector<1x1x1x128xf32>,
    %97 = arith.mulf %23, %27 : vector<2x128xf32>
    %c3_i32 = arith.constant 3 : i32
    %98 = vector.broadcast %c3_i32 : i32 to vector<2x128xi32>
    %99 = arith.cmpi eq, %4, %98 : vector<2x128xi32>
    %100 = arith.extui %99 : vector<2x128xi1> to vector<2x128xi32>
    %101 = arith.sitofp %100 : vector<2x128xi32> to vector<2x128xf32>
    %c0_71 = arith.constant 0 : index
    %c0_72 = arith.constant 0 : index
    %c3_73 = arith.constant 3 : index
    %c0_74 = arith.constant 0 : index
    %102 = vector.load %arg5[%c0_71, %c0_72, %c3_73, %c0_74] : memref<1x1x4x128xf32, #tpu.memory_space<vmem>>, vector<1x1x1x128xf32>
    %103 = vector.shape_cast %102 : vector<1x1x1x128xf32> to vector<1x128xf32>
    %104 = arith.mulf %97, %101 : vector<2x128xf32>
    %cst_75 = arith.constant dense<0.000000e+00> : vector<128xf32>
    %105 = vector.multi_reduction <add>, %104, %cst_75 [0] : vector<2x128xf32> to vector<128xf32>
    %106 = vector.shape_cast %105 : vector<128xf32> to vector<1x128xf32>
    %107 = arith.addf %103, %106 : vector<1x128xf32>
    %c0_76 = arith.constant 0 : index
    %c0_77 = arith.constant 0 : index
    %c3_78 = arith.constant 3 : index
    %c0_79 = arith.constant 0 : index
    %108 = vector.load %arg5[%c0_76, %c0_77, %c3_78, %c0_79] : memref<1x1x4x128xf32, #tpu.memory_space<vmem>>, vector<1x1x1x128xf32>
    %109 = vector.shape_cast %108 : vector<1x1x1x128xf32> to vector<1x128xf32>
    %110 = vector.shape_cast %107 : vector<1x128xf32> to vector<1x1x1x128xf32>
    tpu.vector_store %arg5[%c0_76, %c0_77, %c3_78, %c0_79], %110 {strides = array<i32>} : memref<1x1x4x128xf32, #tpu.memory_space<vmem>>, vector<1x1x1x128xf32>,
    %c0_80 = arith.constant 0 : index
    %c0_81 = arith.constant 0 : index
    %c3_82 = arith.constant 3 : index
    %c0_83 = arith.constant 0 : index
    %111 = vector.load %arg6[%c0_80, %c0_81, %c3_82, %c0_83] : memref<1x1x4x128xf32, #tpu.memory_space<vmem>>, vector<1x1x1x128xf32>
    %112 = vector.shape_cast %111 : vector<1x1x1x128xf32> to vector<1x128xf32>
    %113 = arith.addf %97, %101 : vector<2x128xf32>
    %cst_84 = arith.constant dense<0.000000e+00> : vector<128xf32>
    %114 = vector.multi_reduction <add>, %113, %cst_84 [0] : vector<2x128xf32> to vector<128xf32>
    %115 = vector.shape_cast %114 : vector<128xf32> to vector<1x128xf32>
    %116 = arith.addf %112, %115 : vector<1x128xf32>
    %c0_85 = arith.constant 0 : index
    %c0_86 = arith.constant 0 : index
    %c3_87 = arith.constant 3 : index
    %c0_88 = arith.constant 0 : index
    %117 = vector.load %arg6[%c0_85, %c0_86, %c3_87, %c0_88] : memref<1x1x4x128xf32, #tpu.memory_space<vmem>>, vector<1x1x1x128xf32>
    %118 = vector.shape_cast %117 : vector<1x1x1x128xf32> to vector<1x128xf32>
    %119 = vector.shape_cast %116 : vector<1x128xf32> to vector<1x1x1x128xf32>
    tpu.vector_store %arg6[%c0_85, %c0_86, %c3_87, %c0_88], %119 {strides = array<i32>} : memref<1x1x4x128xf32, #tpu.memory_space<vmem>>, vector<1x1x1x128xf32>,
    return
  }
  func.func @transform_0(%arg0: i32, %arg1: i32, %arg2: i32) -> (i32, i32, i32, i32) {
    %c1_i32 = arith.constant 1 : i32
    %0 = arith.muli %arg0, %c1_i32 : i32
    %1 = arith.addi %0, %arg2 : i32
    %c0_i32 = arith.constant 0 : i32
    %2 = arith.minsi %1, %c0_i32 : i32
    %c0_i32_0 = arith.constant 0 : i32
    %c0_i32_1 = arith.constant 0 : i32
    %c0_i32_2 = arith.constant 0 : i32
    return %arg1, %c0_i32_0, %2, %c0_i32_1 : i32, i32, i32, i32
  }
  func.func @transform_1(%arg0: i32, %arg1: i32, %arg2: i32) -> (i32, i32, i32, i32) {
    %c1_i32 = arith.constant 1 : i32
    %0 = arith.muli %arg0, %c1_i32 : i32
    %1 = arith.addi %0, %arg2 : i32
    %c0_i32 = arith.constant 0 : i32
    %2 = arith.minsi %1, %c0_i32 : i32
    %c0_i32_0 = arith.constant 0 : i32
    %c0_i32_1 = arith.constant 0 : i32
    %c0_i32_2 = arith.constant 0 : i32
    return %arg1, %c0_i32_0, %2, %c0_i32_1 : i32, i32, i32, i32
  }
  func.func @transform_2(%arg0: i32, %arg1: i32, %arg2: i32) -> (i32, i32, i32, i32) {
    %c0_i32 = arith.constant 0 : i32
    %c0_i32_0 = arith.constant 0 : i32
    %c0_i32_1 = arith.constant 0 : i32
    return %arg0, %arg1, %c0_i32, %c0_i32_0 : i32, i32, i32, i32
  }
  func.func @transform_3(%arg0: i32, %arg1: i32, %arg2: i32) -> (i32, i32, i32, i32) {
    %c0_i32 = arith.constant 0 : i32
    %c0_i32_0 = arith.constant 0 : i32
    %c0_i32_1 = arith.constant 0 : i32
    return %arg0, %arg1, %c0_i32, %c0_i32_0 : i32, i32, i32, i32
  }
}

</mosaic_0001>

<llo_original>
// kernel: dice_loss.1
$region0: #{dice_loss.1}
  #allocation0 [shape = 'u32[]', space=smem, size = 0x4, offset = 0x4, fixed_abs, tag = 'smem constant byte address 0x4 - core index']
  #allocation1 [shape = 'u32[72,128]{1,0:T(1,128)}', space=vmem, size = 0x9000, scoped, tag = 'internal scratch']
  %s0 = inlined_call_operand.vmem [shape: f32[2,4,2,128], index: 0, kind: input, shape index: {}]
  %s1 = inlined_call_operand.vmem [shape: s32[2,1,2,128], index: 1, kind: input, shape index: {}]
  %s2 = inlined_call_operand.vmem [shape: f32[1,2,4,128], index: 2, kind: output, shape index: {0}]
  %s3 = inlined_call_operand.vmem [shape: f32[1,2,4,128], index: 3, kind: output, shape index: {1}]
  %4 = xla_tuple %s2, %s3
  %s5 = sld [smem:[#allocation0]]
  $region53: #{dice_loss.1} parent=0
    _
  %s7 = ssub.s32 1, %s5
  %s8 = scalar_select 0, %s7, %s5
  loop: start=0, step=1, limit=4
  $region2: #{dice_loss.1} parent=0 // loop_pre_header
    _
  $region3: #{dice_loss.1} parent=0 // loop_header
    %s10 = sphi 0, %s14
    %p11 = scmp.ge.s32.totalorder %s10, 4
    %s17 = sphi 0, %s36
    %s18 = sphi 0, %s32
    %s19 = sphi 0, %s28
    %s20 = sphi 0, %s17
    %s21 = sphi 0, %s18
    %s22 = sphi 0, %s19
    %s23 = sphi 0, %s20
    %s24 = sphi 0, %s21
    %s25 = sphi 0, %s22
    %s47 = sphi 0, %s49
    %s50 = sphi 0, %s47
    %s51 = sphi 0, %s50
    %s67 = sphi 0, %s51
    %s81 = sphi 0, %s83
    %s84 = sphi 0, %s81
    %s85 = sphi 0, %s84
    %s101 = sphi 0, %s85
    %s109 = sphi 0, %s111
    %s112 = sphi 0, %s109
    %s113 = sphi 0, %s112
    %s129 = sphi 0, %s113
    %s137 = sphi 0, %s139
    %s140 = sphi 0, %s137
    %s141 = sphi 0, %s140
    %s157 = sphi 0, %s141
  $region4: #{dice_loss.1} parent=0 // loop_header_branch
    %13 = sbr.rel (%p11) target = $region8
  $region5: #{dice_loss.1} parent=0 // loop_body
    %s15 = ssub.s32 %s10, 1
    %s16 = ssub.s32 %s10, 2
    %s26 = sadd.s32 1, %s19
    %p27 = scmp.ge.s32.totalorder %s26, 1
    %s28 = scalar_select %p27, 0, %s26
    %s29 = sadd.s32 1, %s18
    %s30 = scalar_select %p27, %s29, %s18
    %p31 = scmp.ge.s32.totalorder %s30, 2
    %s32 = scalar_select %p31, 0, %s30
    %s33 = sadd.s32 1, %s17
    %s34 = scalar_select %p31, %s33, %s17
    %p35 = scmp.ge.s32.totalorder %s34, 1
    %s36 = scalar_select %p35, 0, %s34
    %s37 = sadd.s32 %s17, %s19
    %p38 = scmp.lt.s32.totalorder %s37, 0
    %s39 = scalar_select %p38, %s37, 0
    %s40 = sadd.s32 %s36, %s28
    %p41 = scmp.lt.s32.totalorder %s40, 0
    %s42 = scalar_select %p41, %s40, 0
    %s43 = ssub.s32 %s18, %s32
    %s44 = ssub.s32 %s39, %s42
    %s45 = sor.u32 %s43, %s44
    %p46 = scmp.eq.s32.totalorder %s45, 0
    %s48 = sadd.s32 %s47, 1
    %s49 = scalar_select %p46, %s47, %s48
    %p52 = pneg %p46
    %p53 = scmp.eq.s32.totalorder %s10, 1
    %p54 = por %p52, %p53
    %p55 = scmp.ne.s32.totalorder %s47, %s50
    %p56 = scmp.eq.s32.totalorder %s10, 0
    %p57 = por %p55, %p56
    %p58 = scmp.ne.s32.totalorder %s47, %s50
    %p59 = scmp.eq.s32.totalorder %s15, 1
    %p60 = por %p58, %p59
    %p61 = scmp.ne.s32.totalorder %s50, %s51
    %p62 = scmp.eq.s32.totalorder %s15, 0
    %p63 = por %p61, %p62
    %p64 = scmp.ne.s32.totalorder %s50, %s51
    %p65 = scmp.eq.s32.totalorder %s16, 1
    %p66 = por %p64, %p65
    %p68 = scmp.ne.s32.totalorder %s51, %s67
    %p69 = scmp.eq.s32.totalorder %s16, 0
    %p70 = por %p68, %p69
    %s71 = sadd.s32 %s17, %s19
    %p72 = scmp.lt.s32.totalorder %s71, 0
    %s73 = scalar_select %p72, %s71, 0
    %s74 = sadd.s32 %s36, %s28
    %p75 = scmp.lt.s32.totalorder %s74, 0
    %s76 = scalar_select %p75, %s74, 0
    %s77 = ssub.s32 %s18, %s32
    %s78 = ssub.s32 %s73, %s76
    %s79 = sor.u32 %s77, %s78
    %p80 = scmp.eq.s32.totalorder %s79, 0
    %s82 = sadd.s32 %s81, 1
    %s83 = scalar_select %p80, %s81, %s82
    %p86 = pneg %p80
    %p87 = scmp.eq.s32.totalorder %s10, 1
    %p88 = por %p86, %p87
    %p89 = scmp.ne.s32.totalorder %s81, %s84
    %p90 = scmp.eq.s32.totalorder %s10, 0
    %p91 = por %p89, %p90
    %p92 = scmp.ne.s32.totalorder %s81, %s84
    %p93 = scmp.eq.s32.totalorder %s15, 1
    %p94 = por %p92, %p93
    %p95 = scmp.ne.s32.totalorder %s84, %s85
    %p96 = scmp.eq.s32.totalorder %s15, 0
    %p97 = por %p95, %p96
    %p98 = scmp.ne.s32.totalorder %s84, %s85
    %p99 = scmp.eq.s32.totalorder %s16, 1
    %p100 = por %p98, %p99
    %p102 = scmp.ne.s32.totalorder %s85, %s101
    %p103 = scmp.eq.s32.totalorder %s16, 0
    %p104 = por %p102, %p103
    %s105 = ssub.s32 %s17, %s36
    %s106 = ssub.s32 %s18, %s32
    %s107 = sor.u32 %s105, %s106
    %p108 = scmp.eq.s32.totalorder %s107, 0
    %s110 = sadd.s32 %s109, 1
    %s111 = scalar_select %p108, %s109, %s110
    %p114 = pneg %p108
    %p115 = scmp.eq.s32.totalorder %s10, 1
    %p116 = por %p114, %p115
    %p117 = scmp.ne.s32.totalorder %s109, %s112
    %p118 = scmp.eq.s32.totalorder %s10, 0
    %p119 = por %p117, %p118
    %p120 = scmp.ne.s32.totalorder %s109, %s112
    %p121 = scmp.eq.s32.totalorder %s15, 1
    %p122 = por %p120, %p121
    %p123 = scmp.ne.s32.totalorder %s112, %s113
    %p124 = scmp.eq.s32.totalorder %s15, 0
    %p125 = por %p123, %p124
    %p126 = scmp.ne.s32.totalorder %s112, %s113
    %p127 = scmp.eq.s32.totalorder %s16, 1
    %p128 = por %p126, %p127
    %p130 = scmp.ne.s32.totalorder %s113, %s129
    %p131 = scmp.eq.s32.totalorder %s16, 0
    %p132 = por %p130, %p131
    %s133 = ssub.s32 %s17, %s36
    %s134 = ssub.s32 %s18, %s32
    %s135 = sor.u32 %s133, %s134
    %p136 = scmp.eq.s32.totalorder %s135, 0
    %s138 = sadd.s32 %s137, 1
    %s139 = scalar_select %p136, %s137, %s138
    %p142 = pneg %p136
    %p143 = scmp.eq.s32.totalorder %s10, 1
    %p144 = por %p142, %p143
    %p145 = scmp.ne.s32.totalorder %s137, %s140
    %p146 = scmp.eq.s32.totalorder %s10, 0
    %p147 = por %p145, %p146
    %p148 = scmp.ne.s32.totalorder %s137, %s140
    %p149 = scmp.eq.s32.totalorder %s15, 1
    %p150 = por %p148, %p149
    %p151 = scmp.ne.s32.totalorder %s140, %s141
    %p152 = scmp.eq.s32.totalorder %s15, 0
    %p153 = por %p151, %p152
    %p154 = scmp.ne.s32.totalorder %s140, %s141
    %p155 = scmp.eq.s32.totalorder %s16, 1
    %p156 = por %p154, %p155
    %p158 = scmp.ne.s32.totalorder %s141, %s157
    %p159 = scmp.eq.s32.totalorder %s16, 0
    %p160 = por %p158, %p159
    %p161 = scmp.le.s32.totalorder 1, %s10
    %p162 = scmp.lt.s32.totalorder %s10, 3
    %p163 = pnand %p161, %p162
    %p164 = pneg %p163
    // Predicated region
    $region9: #{dice_loss.1} parent=5 // pred_check
      _
    $region10: #{dice_loss.1} parent=5 // pred_check_branch
      %166 = sbr.rel (%p163) target = $region12
    $region11: #{dice_loss.1} parent=5 // pred_region
      %s167 = ssub.s32 %s10, 1
    $region12: #{dice_loss.1} parent=5 // pred_fallthru
      _
    %p168 = scmp.lt.s32.totalorder %s10, 2
    // Predicated region
    $region13: #{dice_loss.1} parent=5 // pred_check
      %p169 = pneg %p168
    $region14: #{dice_loss.1} parent=5 // pred_check_branch
      %171 = sbr.rel (%p169) target = $region16
    $region15: #{dice_loss.1} parent=5 // pred_region
      // Predicated region
      $region17: #{dice_loss.1} parent=15 // pred_check
        %p172 = pneg %p57
      $region18: #{dice_loss.1} parent=15 // pred_check_branch
        %174 = sbr.rel (%p172) target = $region20
      $region19: #{dice_loss.1} parent=15 // pred_region
        %s175 = sadd.s32 %s17, %s19
        %p176 = scmp.lt.s32.totalorder %s175, 0
        %s177 = scalar_select %p176, %s175, 0
        %p178 = scmp.lt.s32.totalorder %s18, 1
        %s179 = scalar_select %p178, %s18, 1
        %p180 = scmp.lt.s32.totalorder %s177, 0
        %s181 = scalar_select %p180, %s177, 0
        %s182 = smul.addr %s179, 4
        %s183 = sadd.s32 %s181, %s182
        %s184 = smul.addr %s183, 2
        %s185 = scalar_lea.vmem %s0, %s184
        %s186 = sadd.s32 %s17, %s19
        %p187 = scmp.lt.s32.totalorder %s186, 0
        %s188 = scalar_select %p187, %s186, 0
      $region20: #{dice_loss.1} parent=15 // pred_fallthru
        _
      // Predicated region
      $region21: #{dice_loss.1} parent=15 // pred_check
        %p189 = pneg %p91
      $region22: #{dice_loss.1} parent=15 // pred_check_branch
        %191 = sbr.rel (%p189) target = $region24
      $region23: #{dice_loss.1} parent=15 // pred_region
        %s192 = sadd.s32 %s17, %s19
        %p193 = scmp.lt.s32.totalorder %s192, 0
        %s194 = scalar_select %p193, %s192, 0
        %p195 = scmp.lt.s32.totalorder %s18, 1
        %s196 = scalar_select %p195, %s18, 1
        %p197 = scmp.lt.s32.totalorder %s194, 0
        %s198 = scalar_select %p197, %s194, 0
        %s199 = sadd.s32 %s198, %s196
        %s200 = smul.addr %s199, 2
        %s201 = scalar_lea.vmem %s1, %s200
        %s202 = sadd.s32 %s17, %s19
        %p203 = scmp.lt.s32.totalorder %s202, 0
        %s204 = scalar_select %p203, %s202, 0
      $region24: #{dice_loss.1} parent=15 // pred_fallthru
        _
    $region16: #{dice_loss.1} parent=5 // pred_fallthru
      _
    %p205 = scmp.le.s32.totalorder 1, %s10
    %p206 = scmp.lt.s32.totalorder %s10, 3
    %p207 = pnand %p205, %p206
    %p208 = pneg %p207
    // Predicated region
    $region25: #{dice_loss.1} parent=5 // pred_check
      _
    $region26: #{dice_loss.1} parent=5 // pred_check_branch
      %210 = sbr.rel (%p207) target = $region28
    $region27: #{dice_loss.1} parent=5 // pred_region
      %s211 = ssub.s32 %s10, 1
      %s212 = sadd.s32 %s20, %s22
      %p213 = scmp.lt.s32.totalorder %s212, 0
      %s214 = scalar_select %p213, %s212, 0
      %p215 = scmp.lt.s32.totalorder %s21, 1
      %s216 = scalar_select %p215, %s21, 1
      %p217 = scmp.lt.s32.totalorder %s214, 0
      %s218 = scalar_select %p217, %s214, 0
      %s219 = smul.addr %s216, 4
      %s220 = sadd.s32 %s218, %s219
      %s221 = smul.addr %s220, 2
      %s222 = scalar_lea.vmem %s0, %s221
      %p223 = pneg %p63
      %p224 = pneg %p60
      %s225 = sadd.s32 %s20, %s22
      %p226 = scmp.lt.s32.totalorder %s225, 0
      %s227 = scalar_select %p226, %s225, 0
      %p228 = scmp.lt.s32.totalorder %s21, 1
      %s229 = scalar_select %p228, %s21, 1
      %p230 = scmp.lt.s32.totalorder %s227, 0
      %s231 = scalar_select %p230, %s227, 0
      %s232 = sadd.s32 %s231, %s229
      %s233 = smul.addr %s232, 2
      %s234 = scalar_lea.vmem %s1, %s233
      %p235 = pneg %p97
      %p236 = pneg %p94
      %p237 = pneg %p125
      %p238 = pneg %p122
      %p239 = scmp.lt.s32.totalorder %s20, 0
      %s240 = scalar_select %p239, %s20, 0
      %p241 = scmp.lt.s32.totalorder %s21, 1
      %s242 = scalar_select %p241, %s21, 1
      %s243 = smul.addr %s240, 2
      %s244 = sadd.s32 %s242, %s243
      %s245 = smul.addr %s244, 4
      %s246 = scalar_lea.vmem %s2, %s245
      %p247 = pneg %p153
      %p248 = pneg %p150
      %p249 = scmp.lt.s32.totalorder %s20, 0
      %s250 = scalar_select %p249, %s20, 0
      %p251 = scmp.lt.s32.totalorder %s21, 1
      %s252 = scalar_select %p251, %s21, 1
      %s253 = smul.addr %s250, 2
      %s254 = sadd.s32 %s252, %s253
      %s255 = smul.addr %s254, 4
      %s256 = scalar_lea.vmem %s3, %s255
      %s257 = sadd.s32 %s20, %s22
      %p258 = scmp.lt.s32.totalorder %s257, 0
      %s259 = scalar_select %p258, %s257, 0
      %p260 = scmp.lt.s32.totalorder %s21, 1
      %s261 = scalar_select %p260, %s21, 1
      %p262 = scmp.lt.s32.totalorder %s259, 0
      %s263 = scalar_select %p262, %s259, 0
      %s264 = smul.addr %s261, 4
      %s265 = sadd.s32 %s263, %s264
      %s266 = smul.addr %s265, 2
      %s267 = scalar_lea.vmem %s0, %s266
      %s268 = sadd.s32 %s20, %s22
      %p269 = scmp.lt.s32.totalorder %s268, 0
      %s270 = scalar_select %p269, %s268, 0
      %s271 = sadd.s32 %s20, %s22
      %p272 = scmp.lt.s32.totalorder %s271, 0
      %s273 = scalar_select %p272, %s271, 0
      %p274 = scmp.lt.s32.totalorder %s21, 1
      %s275 = scalar_select %p274, %s21, 1
      %p276 = scmp.lt.s32.totalorder %s273, 0
      %s277 = scalar_select %p276, %s273, 0
      %s278 = sadd.s32 %s277, %s275
      %s279 = smul.addr %s278, 2
      %s280 = scalar_lea.vmem %s1, %s279
      %s281 = sadd.s32 %s20, %s22
      %p282 = scmp.lt.s32.totalorder %s281, 0
      %s283 = scalar_select %p282, %s281, 0
      %p284 = scmp.lt.s32.totalorder %s20, 0
      %s285 = scalar_select %p284, %s20, 0
      %p286 = scmp.lt.s32.totalorder %s21, 1
      %s287 = scalar_select %p286, %s21, 1
      %s288 = smul.addr %s285, 2
      %s289 = sadd.s32 %s287, %s288
      %s290 = smul.addr %s289, 4
      %s291 = scalar_lea.vmem %s2, %s290
      %p292 = scmp.lt.s32.totalorder %s20, 0
      %s293 = scalar_select %p292, %s20, 0
      %p294 = scmp.lt.s32.totalorder %s21, 1
      %s295 = scalar_select %p294, %s21, 1
      %s296 = smul.addr %s293, 2
      %s297 = sadd.s32 %s295, %s296
      %s298 = smul.addr %s297, 4
      %s299 = scalar_lea.vmem %s3, %s298
      %p300 = scmp.eq.s32.totalorder %s22, 0
      // Predicated region
      $region29: #{dice_loss.1} parent=27 // pred_check
        %p301 = pneg %p300
      $region30: #{dice_loss.1} parent=27 // pred_check_branch
        %303 = sbr.rel (%p301) target = $region32
      $region31: #{dice_loss.1} parent=27 // pred_region
        %304 = vst [vmem:[%s291] sm:$0xf] 0.0
        %305 = vst [vmem:[%s299] sm:$0xf] 0.0
      $region32: #{dice_loss.1} parent=27 // pred_fallthru
        _
      %v306 = vld [vmem:[%s280] sm:$0x3]
      %v307 = vld [vmem:[%s267] sm:$0x3]
      %s308 = scalar_lea.vmem %s267, 2
      %v309 = vld [vmem:[%s308] sm:$0x3]
      %s310 = scalar_lea.vmem %s267, 4
      %v311 = vld [vmem:[%s310] sm:$0x3]
      %s312 = scalar_lea.vmem %s267, 6
      %v313 = vld [vmem:[%s312] sm:$0x3]
      %v314 = vmax.f32 %v307, %v309
      %v315 = vmax.f32 %v314, %v311
      %v316 = vmax.f32 %v315, %v313
      %v317 = vsub.f32 %v307, %v316
      %v318 = vmul.f32 %v317, 1.442695
      %v319 = vpow.pop %v318
      %v320 = vsub.f32 %v309, %v316
      %v321 = vmul.f32 %v320, 1.442695
      %v322 = vpow.pop %v321
      %v323 = vsub.f32 %v311, %v316
      %v324 = vmul.f32 %v323, 1.442695
      %v325 = vpow.pop %v324
      %v326 = vsub.f32 %v313, %v316
      %v327 = vmul.f32 %v326, 1.442695
      %v328 = vpow.pop %v327
      %v329 = vadd.f32 %v319, %v322
      %v330 = vadd.f32 %v329, %v325
      %v331 = vadd.f32 %v330, %v328
      %v332 = vrcp.pop %v331
      %v333 = vmul.f32 %v331, %v332
      %v334 = vsub.f32 1.0, %v333
      %v335 = vmul.f32 %v332, %v334
      %v336 = vadd.f32 %v332, %v335
      %vm337 = vweird.f32 %v331
      %vm338 = vweird.f32 %v332
      %vm339 = vmor %vm337, %vm338
      %v340 = vsel %vm339, %v332, %v336
      %v341 = vand.u32 2147483647, %v331
      %vm342 = vcmp.eq.f32.partialorder %v341, 8.507059e+37
      %v343 = vand.u32 %v331, 2147483648
      %v344 = vor.u32 1.1754944e-38, %v343
      %v345 = vsel %vm342, %v344, %v340
      %v346 = vmul.f32 %v319, %v345
      %vm347 = vcmp.eq.s32.totalorder %v306, 0
      %v348 = vsel %vm347, 1, 0
      %v349 = vcvt.s32.f32 %v348
      %v350 = vld [vmem:[%s291] sm:$0x1]
      %v351 = vmul.f32 %v346, %v349
      %vm352 = vcmask 1041408
      %v353 = vsel %vm352, %v351, 0.0
      %v354 = vrot.slane %v353, 4
      %v355 = vadd.f32 %v353, %v354
      %v356 = vrot.slane %v355, 2
      %v357 = vadd.f32 %v355, %v356
      %v358 = vrot.slane %v357, 1
      %v359 = vadd.f32 %v357, %v358
      %v360 = vadd.f32 %v350, %v359
      %361 = vst [vmem:[%s291] sm:$0x1] %v360
      %v362 = vld [vmem:[%s299] sm:$0x1]
      %v363 = vadd.f32 %v346, %v349
      %v364 = vsel %vm352, %v363, 0.0
      %v365 = vrot.slane %v364, 4
      %v366 = vadd.f32 %v364, %v365
      %v367 = vrot.slane %v366, 2
      %v368 = vadd.f32 %v366, %v367
      %v369 = vrot.slane %v368, 1
      %v370 = vadd.f32 %v368, %v369
      %v371 = vadd.f32 %v362, %v370
      %372 = vst [vmem:[%s299] sm:$0x1] %v371
      %v373 = vmul.f32 %v322, %v345
      %vm374 = vcmp.eq.s32.totalorder %v306, 1
      %v375 = vsel %vm374, 1, 0
      %v376 = vcvt.s32.f32 %v375
      %v377 = vld [vmem:[%s291 + $0x1] sm:$0x1]
      %v378 = vmul.f32 %v373, %v376
      %v379 = vsel %vm352, %v378, 0.0
      %v380 = vrot.slane %v379, 4
      %v381 = vadd.f32 %v379, %v380
      %v382 = vrot.slane %v381, 2
      %v383 = vadd.f32 %v381, %v382
      %v384 = vrot.slane %v383, 1
      %v385 = vadd.f32 %v383, %v384
      %v386 = vadd.f32 %v377, %v385
      %387 = vst [vmem:[%s291 + $0x1] sm:$0x1] %v386
      %v388 = vld [vmem:[%s299 + $0x1] sm:$0x1]
      %v389 = vadd.f32 %v373, %v376
      %v390 = vsel %vm352, %v389, 0.0
      %v391 = vrot.slane %v390, 4
      %v392 = vadd.f32 %v390, %v391
      %v393 = vrot.slane %v392, 2
      %v394 = vadd.f32 %v392, %v393
      %v395 = vrot.slane %v394, 1
      %v396 = vadd.f32 %v394, %v395
      %v397 = vadd.f32 %v388, %v396
      %398 = vst [vmem:[%s299 + $0x1] sm:$0x1] %v397
      %v399 = vmul.f32 %v325, %v345
      %vm400 = vcmp.eq.s32.totalorder %v306, 2
      %v401 = vsel %vm400, 1, 0
      %v402 = vcvt.s32.f32 %v401
      %v403 = vld [vmem:[%s291 + $0x2] sm:$0x1]
      %v404 = vmul.f32 %v399, %v402
      %v405 = vsel %vm352, %v404, 0.0
      %v406 = vrot.slane %v405, 4
      %v407 = vadd.f32 %v405, %v406
      %v408 = vrot.slane %v407, 2
      %v409 = vadd.f32 %v407, %v408
      %v410 = vrot.slane %v409, 1
      %v411 = vadd.f32 %v409, %v410
      %v412 = vadd.f32 %v403, %v411
      %413 = vst [vmem:[%s291 + $0x2] sm:$0x1] %v412
      %v414 = vld [vmem:[%s299 + $0x2] sm:$0x1]
      %v415 = vadd.f32 %v399, %v402
      %v416 = vsel %vm352, %v415, 0.0
      %v417 = vrot.slane %v416, 4
      %v418 = vadd.f32 %v416, %v417
      %v419 = vrot.slane %v418, 2
      %v420 = vadd.f32 %v418, %v419
      %v421 = vrot.slane %v420, 1
      %v422 = vadd.f32 %v420, %v421
      %v423 = vadd.f32 %v414, %v422
      %424 = vst [vmem:[%s299 + $0x2] sm:$0x1] %v423
      %v425 = vmul.f32 %v328, %v345
      %vm426 = vcmp.eq.s32.totalorder %v306, 3
      %v427 = vsel %vm426, 1, 0
      %v428 = vcvt.s32.f32 %v427
      %v429 = vld [vmem:[%s291 + $0x3] sm:$0x1]
      %v430 = vmul.f32 %v425, %v428
      %v431 = vsel %vm352, %v430, 0.0
      %v432 = vrot.slane %v431, 4
      %v433 = vadd.f32 %v431, %v432
      %v434 = vrot.slane %v433, 2
      %v435 = vadd.f32 %v433, %v434
      %v436 = vrot.slane %v435, 1
      %v437 = vadd.f32 %v435, %v436
      %v438 = vadd.f32 %v429, %v437
      %439 = vst [vmem:[%s291 + $0x3] sm:$0x1] %v438
      %v440 = vld [vmem:[%s299 + $0x3] sm:$0x1]
      %v441 = vadd.f32 %v425, %v428
      %v442 = vsel %vm352, %v441, 0.0
      %v443 = vrot.slane %v442, 4
      %v444 = vadd.f32 %v442, %v443
      %v445 = vrot.slane %v444, 2
      %v446 = vadd.f32 %v444, %v445
      %v447 = vrot.slane %v446, 1
      %v448 = vadd.f32 %v446, %v447
      %v449 = vadd.f32 %v440, %v448
      %450 = vst [vmem:[%s299 + $0x3] sm:$0x1] %v449
      %p451 = scmp.lt.s32.totalorder %s20, 0
      %s452 = scalar_select %p451, %s20, 0
      %p453 = scmp.lt.s32.totalorder %s21, 1
      %s454 = scalar_select %p453, %s21, 1
      %s455 = smul.addr %s452, 2
      %s456 = sadd.s32 %s454, %s455
      %s457 = smul.addr %s456, 4
      %s458 = scalar_lea.vmem %s2, %s457
      %p459 = scmp.lt.s32.totalorder %s20, 0
      %s460 = scalar_select %p459, %s20, 0
      %p461 = scmp.lt.s32.totalorder %s21, 1
      %s462 = scalar_select %p461, %s21, 1
      %s463 = smul.addr %s460, 2
      %s464 = sadd.s32 %s462, %s463
      %s465 = smul.addr %s464, 4
      %s466 = scalar_lea.vmem %s3, %s465
      // Predicated region
      $region33: #{dice_loss.1} parent=27 // pred_check
        %p467 = pneg %p122
      $region34: #{dice_loss.1} parent=27 // pred_check_branch
        %469 = sbr.rel (%p467) target = $region36
      $region35: #{dice_loss.1} parent=27 // pred_region
        _
      $region36: #{dice_loss.1} parent=27 // pred_fallthru
        _
      // Predicated region
      $region37: #{dice_loss.1} parent=27 // pred_check
        %p470 = pneg %p150
      $region38: #{dice_loss.1} parent=27 // pred_check_branch
        %472 = sbr.rel (%p470) target = $region40
      $region39: #{dice_loss.1} parent=27 // pred_region
        _
      $region40: #{dice_loss.1} parent=27 // pred_fallthru
        _
    $region28: #{dice_loss.1} parent=5 // pred_fallthru
      _
    %p473 = scmp.le.s32.totalorder 2, %s10
    // Predicated region
    $region41: #{dice_loss.1} parent=5 // pred_check
      %p474 = pneg %p473
    $region42: #{dice_loss.1} parent=5 // pred_check_branch
      %476 = sbr.rel (%p474) target = $region44
    $region43: #{dice_loss.1} parent=5 // pred_region
      %s477 = ssub.s32 %s10, 2
      // Predicated region
      $region45: #{dice_loss.1} parent=43 // pred_check
        %p478 = pneg %p128
      $region46: #{dice_loss.1} parent=43 // pred_check_branch
        %480 = sbr.rel (%p478) target = $region48
      $region47: #{dice_loss.1} parent=43 // pred_region
        %p481 = scmp.lt.s32.totalorder %s23, 0
        %s482 = scalar_select %p481, %s23, 0
        %p483 = scmp.lt.s32.totalorder %s24, 1
        %s484 = scalar_select %p483, %s24, 1
        %s485 = smul.addr %s482, 2
        %s486 = sadd.s32 %s484, %s485
        %s487 = smul.addr %s486, 4
        %s488 = scalar_lea.vmem %s2, %s487
      $region48: #{dice_loss.1} parent=43 // pred_fallthru
        _
      // Predicated region
      $region49: #{dice_loss.1} parent=43 // pred_check
        %p489 = pneg %p156
      $region50: #{dice_loss.1} parent=43 // pred_check_branch
        %491 = sbr.rel (%p489) target = $region52
      $region51: #{dice_loss.1} parent=43 // pred_region
        %p492 = scmp.lt.s32.totalorder %s23, 0
        %s493 = scalar_select %p492, %s23, 0
        %p494 = scmp.lt.s32.totalorder %s24, 1
        %s495 = scalar_select %p494, %s24, 1
        %s496 = smul.addr %s493, 2
        %s497 = sadd.s32 %s495, %s496
        %s498 = smul.addr %s497, 4
        %s499 = scalar_lea.vmem %s3, %s498
      $region52: #{dice_loss.1} parent=43 // pred_fallthru
        _
    $region44: #{dice_loss.1} parent=5 // pred_fallthru
      _
  $region6: #{dice_loss.1} parent=0 // loop_footer
    %s14 = sadd.s32 1, %s10
  $region7: #{dice_loss.1} parent=0 // loop_footer_branch
    %9 = sbr.rel target = $region3
  $region8: #{dice_loss.1} parent=0 // loop_exit
    _

</llo_original>
